<compile_context>
chip_gen: v7x
topology: tpu7x:2x2x1
jax: 0.10.0
libtpu: 0.0.40
codegen_flags: <defaults>
</compile_context>

<pallas_src>
import jax
import jax.numpy as jnp
from jax import lax
from jax.experimental import pallas as pl
from jax.experimental.pallas import tpu as pltpu


def embedding_gather_kernel(ids_ref, wte_hbm, out_ref, sem):
    # ids_ref : SMEM (N_pad,) int32 token ids (scalar prefetch, whole array)
    # wte_hbm : HBM  (V, H) embedding table (memory_space=pl.ANY, no auto-DMA)
    # out_ref : VMEM (TQ, H) pipelined output tile -- DMA destination
    # sem     : single DMA semaphore shared by every row copy of this tile
    i = pl.program_id(0)
    tq, _ = out_ref.shape
    v = wte_hbm.shape[0]
    base = pl.multiple_of(i * tq, tq)

    def _issue(t, carry):
        tok = jnp.clip(ids_ref[base + t], 0, v - 1)  # clamp out-of-range ids
        pltpu.make_async_copy(
            wte_hbm.at[pl.ds(tok, 1), :],   # one (1, H) row in HBM
            out_ref.at[pl.ds(t, 1), :],     # its row in the output tile
            sem,
        ).start()
        return carry

    # Issue all TQ row gathers so they are in flight concurrently; unrolled
    # because descriptor issue is bound by the single vector-misc slot.
    lax.fori_loop(0, tq, _issue, 0, unroll=8)

    # Drain them with ONE wait: every copy signalled `sem`, DMA semaphores
    # count bytes, and this descriptor covers the whole (TQ, H) tile.
    pltpu.make_async_copy(out_ref, out_ref, sem).wait()


def _choose_token_tile(n_tokens, h, itemsize, *,
                       tile_budget_bytes=4 << 20, max_tq=1024):
    """Pick the per-step token tile TQ (multiple of 8, VMEM-budgeted)."""
    row_bytes = max(1, h * itemsize)
    tq = min(max_tq, max(8, tile_budget_bytes // row_bytes))
    # Never much larger than the actual token count.
    tq = min(tq, ((n_tokens + 7) // 8) * 8)
    # Give v7x's two TensorCores at least two grid steps when possible.
    if n_tokens >= 16:
        tq = min(tq, max(8, ((n_tokens // 2) // 8) * 8))
    tq -= tq % 8
    return max(8, tq)


def gpt_embeddings_forward(input_ids, wte):
    """Equivalent of GPTEmbeddings.forward: wte(input_ids.view(-1, S))."""
    v, h = wte.shape
    s = input_ids.shape[-1]
    ids2d = input_ids.reshape(-1, s)
    b_flat = ids2d.shape[0]
    n = b_flat * s
    itemsize = jnp.dtype(wte.dtype).itemsize

    tq = _choose_token_tile(n, h, itemsize)
    n_pad = ((n + tq - 1) // tq) * tq

    ids_flat = ids2d.reshape(n).astype(jnp.int32)
    if n_pad != n:  # pad ragged tail with id 0 (rows discarded below)
        ids_flat = jnp.concatenate(
            [ids_flat, jnp.zeros((n_pad - n,), jnp.int32)])

    out = pl.pallas_call(
        embedding_gather_kernel,
        out_shape=jax.ShapeDtypeStruct((n_pad, h), wte.dtype),
        grid_spec=pltpu.PrefetchScalarGridSpec(
            num_scalar_prefetch=1,                  # ids -> SMEM
            grid=(n_pad // tq,),
            in_specs=[
                pl.BlockSpec(memory_space=pl.ANY),  # wte stays in HBM
            ],
            out_specs=pl.BlockSpec((tq, h), lambda i, ids: (i, 0)),
            scratch_shapes=[
                pltpu.SemaphoreType.DMA,            # shared row-DMA semaphore
            ],
        ),
        compiler_params=pltpu.CompilerParams(
            dimension_semantics=("parallel",),      # shard tiles across TCs
            vmem_limit_bytes=32 * 1024 * 1024,      # safe on v5e/v6e/v7x
        ),
    )(ids_flat, wte)

    if n_pad != n:
        out = out[:n]
    return out.reshape(b_flat, s, h)


if __name__ == "__main__":
    # Small synthetic config: vocab_size=128, hidden_size=32, batch=2, seq=8.
    vocab_size = 128
    hidden_size = 32
    batch = 2
    seq = 8

    key = jax.random.PRNGKey(0)
    k_wte, k_ids = jax.random.split(key)

    # Deterministic parameter init (stand-in for nn.Embedding weights).
    wte = jax.random.normal(k_wte, (vocab_size, hidden_size), dtype=jnp.float32)
    input_ids = jax.random.randint(
        k_ids, (batch, seq), minval=0, maxval=vocab_size, dtype=jnp.int32
    )

    hidden_states = gpt_embeddings_forward(input_ids, wte)
    hidden_states = jax.block_until_ready(hidden_states)

    # Reference check against a plain JAX gather (same semantics as nn.Embedding).
    ref = jnp.take(wte, input_ids, axis=0)
    assert hidden_states.shape == (batch, seq, hidden_size)
    assert jnp.allclose(hidden_states, ref, atol=1e-6), "mismatch vs reference gather"

    print("KERNEL_OK")
</pallas_src>

<mosaic_0001>
module attributes {stable_mosaic.version = 11 : i64} {
  func.func @embedding_gather_kernel(%arg0: i32, %arg1: memref<16xi32, #tpu.memory_space<smem>>, %arg2: memref<128x32xf32, #tpu.memory_space<any>>, %arg3: memref<8x32xf32, #tpu.memory_space<vmem>>, %arg4: memref<!tpu.dma_semaphore, #tpu.memory_space<semaphore_mem>>) attributes {dimension_semantics = [#tpu.dimension_semantics<parallel>], iteration_bounds = array<i64: 2>, scalar_prefetch = 1 : i64, scratch_operands = 1 : i64, tpu.core_type = #tpu.core_type<tc>, window_params = [{}, {transform_indices = @transform_1, window_bounds = array<i64: 8, 32>}]} {
    %c8_i32 = arith.constant 8 : i32
    %0 = arith.muli %arg0, %c8_i32 : i32
    %1 = tpu.assume_multiple %0, 8 : i32
    %c0_i32 = arith.constant 0 : i32
    %2 = arith.addi %1, %c0_i32 : i32
    %3 = arith.index_cast %2 : i32 to index
    %4 = memref.load %arg1[%3] : memref<16xi32, #tpu.memory_space<smem>>
    %c0_i32_0 = arith.constant 0 : i32
    %c127_i32 = arith.constant 127 : i32
    %5 = arith.maxsi %c0_i32_0, %4 : i32
    %6 = arith.minsi %c127_i32, %5 : i32
    %c0_i32_1 = arith.constant 0 : i32
    %7 = tpu.memref_slice %arg2[%6, %c0_i32_1] : memref<128x32xf32, #tpu.memory_space<any>> -> memref<1x32xf32, #tpu.memory_space<any>>
    %c0_i32_2 = arith.constant 0 : i32
    %8 = tpu.memref_slice %arg3[%c0_i32, %c0_i32_2] : memref<8x32xf32, #tpu.memory_space<vmem>> -> memref<1x32xf32, #tpu.memory_space<vmem>>
    tpu.enqueue_dma source(%7 : memref<1x32xf32, #tpu.memory_space<any>>) target(%8 : memref<1x32xf32, #tpu.memory_space<vmem>>) target_semaphore(%arg4 : memref<!tpu.dma_semaphore, #tpu.memory_space<semaphore_mem>>)
    %c1_i32 = arith.constant 1 : i32
    %9 = arith.addi %1, %c1_i32 : i32
    %10 = arith.index_cast %9 : i32 to index
    %11 = memref.load %arg1[%10] : memref<16xi32, #tpu.memory_space<smem>>
    %c0_i32_3 = arith.constant 0 : i32
    %c127_i32_4 = arith.constant 127 : i32
    %12 = arith.maxsi %c0_i32_3, %11 : i32
    %13 = arith.minsi %c127_i32_4, %12 : i32
    %c0_i32_5 = arith.constant 0 : i32
    %14 = tpu.memref_slice %arg2[%13, %c0_i32_5] : memref<128x32xf32, #tpu.memory_space<any>> -> memref<1x32xf32, #tpu.memory_space<any>>
    %c0_i32_6 = arith.constant 0 : i32
    %15 = tpu.memref_slice %arg3[%c1_i32, %c0_i32_6] : memref<8x32xf32, #tpu.memory_space<vmem>> -> memref<1x32xf32, #tpu.memory_space<vmem>>
    tpu.enqueue_dma source(%14 : memref<1x32xf32, #tpu.memory_space<any>>) target(%15 : memref<1x32xf32, #tpu.memory_space<vmem>>) target_semaphore(%arg4 : memref<!tpu.dma_semaphore, #tpu.memory_space<semaphore_mem>>)
    %c2_i32 = arith.constant 2 : i32
    %16 = arith.addi %1, %c2_i32 : i32
    %17 = arith.index_cast %16 : i32 to index
    %18 = memref.load %arg1[%17] : memref<16xi32, #tpu.memory_space<smem>>
    %c0_i32_7 = arith.constant 0 : i32
    %c127_i32_8 = arith.constant 127 : i32
    %19 = arith.maxsi %c0_i32_7, %18 : i32
    %20 = arith.minsi %c127_i32_8, %19 : i32
    %c0_i32_9 = arith.constant 0 : i32
    %21 = tpu.memref_slice %arg2[%20, %c0_i32_9] : memref<128x32xf32, #tpu.memory_space<any>> -> memref<1x32xf32, #tpu.memory_space<any>>
    %c0_i32_10 = arith.constant 0 : i32
    %22 = tpu.memref_slice %arg3[%c2_i32, %c0_i32_10] : memref<8x32xf32, #tpu.memory_space<vmem>> -> memref<1x32xf32, #tpu.memory_space<vmem>>
    tpu.enqueue_dma source(%21 : memref<1x32xf32, #tpu.memory_space<any>>) target(%22 : memref<1x32xf32, #tpu.memory_space<vmem>>) target_semaphore(%arg4 : memref<!tpu.dma_semaphore, #tpu.memory_space<semaphore_mem>>)
    %c3_i32 = arith.constant 3 : i32
    %23 = arith.addi %1, %c3_i32 : i32
    %24 = arith.index_cast %23 : i32 to index
    %25 = memref.load %arg1[%24] : memref<16xi32, #tpu.memory_space<smem>>
    %c0_i32_11 = arith.constant 0 : i32
    %c127_i32_12 = arith.constant 127 : i32
    %26 = arith.maxsi %c0_i32_11, %25 : i32
    %27 = arith.minsi %c127_i32_12, %26 : i32
    %c0_i32_13 = arith.constant 0 : i32
    %28 = tpu.memref_slice %arg2[%27, %c0_i32_13] : memref<128x32xf32, #tpu.memory_space<any>> -> memref<1x32xf32, #tpu.memory_space<any>>
    %c0_i32_14 = arith.constant 0 : i32
    %29 = tpu.memref_slice %arg3[%c3_i32, %c0_i32_14] : memref<8x32xf32, #tpu.memory_space<vmem>> -> memref<1x32xf32, #tpu.memory_space<vmem>>
    tpu.enqueue_dma source(%28 : memref<1x32xf32, #tpu.memory_space<any>>) target(%29 : memref<1x32xf32, #tpu.memory_space<vmem>>) target_semaphore(%arg4 : memref<!tpu.dma_semaphore, #tpu.memory_space<semaphore_mem>>)
    %c4_i32 = arith.constant 4 : i32
    %30 = arith.addi %1, %c4_i32 : i32
    %31 = arith.index_cast %30 : i32 to index
    %32 = memref.load %arg1[%31] : memref<16xi32, #tpu.memory_space<smem>>
    %c0_i32_15 = arith.constant 0 : i32
    %c127_i32_16 = arith.constant 127 : i32
    %33 = arith.maxsi %c0_i32_15, %32 : i32
    %34 = arith.minsi %c127_i32_16, %33 : i32
    %c0_i32_17 = arith.constant 0 : i32
    %35 = tpu.memref_slice %arg2[%34, %c0_i32_17] : memref<128x32xf32, #tpu.memory_space<any>> -> memref<1x32xf32, #tpu.memory_space<any>>
    %c0_i32_18 = arith.constant 0 : i32
    %36 = tpu.memref_slice %arg3[%c4_i32, %c0_i32_18] : memref<8x32xf32, #tpu.memory_space<vmem>> -> memref<1x32xf32, #tpu.memory_space<vmem>>
    tpu.enqueue_dma source(%35 : memref<1x32xf32, #tpu.memory_space<any>>) target(%36 : memref<1x32xf32, #tpu.memory_space<vmem>>) target_semaphore(%arg4 : memref<!tpu.dma_semaphore, #tpu.memory_space<semaphore_mem>>)
    %c5_i32 = arith.constant 5 : i32
    %37 = arith.addi %1, %c5_i32 : i32
    %38 = arith.index_cast %37 : i32 to index
    %39 = memref.load %arg1[%38] : memref<16xi32, #tpu.memory_space<smem>>
    %c0_i32_19 = arith.constant 0 : i32
    %c127_i32_20 = arith.constant 127 : i32
    %40 = arith.maxsi %c0_i32_19, %39 : i32
    %41 = arith.minsi %c127_i32_20, %40 : i32
    %c0_i32_21 = arith.constant 0 : i32
    %42 = tpu.memref_slice %arg2[%41, %c0_i32_21] : memref<128x32xf32, #tpu.memory_space<any>> -> memref<1x32xf32, #tpu.memory_space<any>>
    %c0_i32_22 = arith.constant 0 : i32
    %43 = tpu.memref_slice %arg3[%c5_i32, %c0_i32_22] : memref<8x32xf32, #tpu.memory_space<vmem>> -> memref<1x32xf32, #tpu.memory_space<vmem>>
    tpu.enqueue_dma source(%42 : memref<1x32xf32, #tpu.memory_space<any>>) target(%43 : memref<1x32xf32, #tpu.memory_space<vmem>>) target_semaphore(%arg4 : memref<!tpu.dma_semaphore, #tpu.memory_space<semaphore_mem>>)
    %c6_i32 = arith.constant 6 : i32
    %44 = arith.addi %1, %c6_i32 : i32
    %45 = arith.index_cast %44 : i32 to index
    %46 = memref.load %arg1[%45] : memref<16xi32, #tpu.memory_space<smem>>
    %c0_i32_23 = arith.constant 0 : i32
    %c127_i32_24 = arith.constant 127 : i32
    %47 = arith.maxsi %c0_i32_23, %46 : i32
    %48 = arith.minsi %c127_i32_24, %47 : i32
    %c0_i32_25 = arith.constant 0 : i32
    %49 = tpu.memref_slice %arg2[%48, %c0_i32_25] : memref<128x32xf32, #tpu.memory_space<any>> -> memref<1x32xf32, #tpu.memory_space<any>>
    %c0_i32_26 = arith.constant 0 : i32
    %50 = tpu.memref_slice %arg3[%c6_i32, %c0_i32_26] : memref<8x32xf32, #tpu.memory_space<vmem>> -> memref<1x32xf32, #tpu.memory_space<vmem>>
    tpu.enqueue_dma source(%49 : memref<1x32xf32, #tpu.memory_space<any>>) target(%50 : memref<1x32xf32, #tpu.memory_space<vmem>>) target_semaphore(%arg4 : memref<!tpu.dma_semaphore, #tpu.memory_space<semaphore_mem>>)
    %c7_i32 = arith.constant 7 : i32
    %51 = arith.addi %1, %c7_i32 : i32
    %52 = arith.index_cast %51 : i32 to index
    %53 = memref.load %arg1[%52] : memref<16xi32, #tpu.memory_space<smem>>
    %c0_i32_27 = arith.constant 0 : i32
    %c127_i32_28 = arith.constant 127 : i32
    %54 = arith.maxsi %c0_i32_27, %53 : i32
    %55 = arith.minsi %c127_i32_28, %54 : i32
    %c0_i32_29 = arith.constant 0 : i32
    %56 = tpu.memref_slice %arg2[%55, %c0_i32_29] : memref<128x32xf32, #tpu.memory_space<any>> -> memref<1x32xf32, #tpu.memory_space<any>>
    %c0_i32_30 = arith.constant 0 : i32
    %57 = tpu.memref_slice %arg3[%c7_i32, %c0_i32_30] : memref<8x32xf32, #tpu.memory_space<vmem>> -> memref<1x32xf32, #tpu.memory_space<vmem>>
    tpu.enqueue_dma source(%56 : memref<1x32xf32, #tpu.memory_space<any>>) target(%57 : memref<1x32xf32, #tpu.memory_space<vmem>>) target_semaphore(%arg4 : memref<!tpu.dma_semaphore, #tpu.memory_space<semaphore_mem>>)
    %c8_i32_31 = arith.constant 8 : i32
    tpu.wait_dma2 semaphore(%arg4 : memref<!tpu.dma_semaphore, #tpu.memory_space<semaphore_mem>>) src(%arg3 : memref<8x32xf32, #tpu.memory_space<vmem>>) dst(%arg3 : memref<8x32xf32, #tpu.memory_space<vmem>>)
    return
  }
  func.func @transform_1(%arg0: i32, %arg1: memref<16xi32, #tpu.memory_space<smem>>) -> (i32, i32) {
    %c0_i32 = arith.constant 0 : i32
    %c0_i32_0 = arith.constant 0 : i32
    return %arg0, %c0_i32 : i32, i32
  }
}

</mosaic_0001>

<llo_original>
// kernel: tpu_custom_call.1
$region0: #{tpu_custom_call.1}
  #allocation0 [shape = 'u32[]', space=smem, size = 0x4, offset = 0x4, fixed_abs, tag = 'smem constant byte address 0x4 - core index']
  #allocation1 [shape = 'u32[144,128]{1,0:T(1,128)}', space=vmem, size = 0x12000, scoped, tag = 'internal scratch']
  #allocation2 [shape = 's32[1]{0}', space=sflag, size = 0x4, scoped, tag = 'scratch operand']
  #allocation3 [shape = 's32[1]{0}', space=sflag, size = 0x4, scoped, tag = 'scoped memory for tpu_custom_call.1']
  #allocation4 [shape = 'u8[512]{0}', space=smem, size = 0x200, scoped, tag = 'prefetched SMEM operand 0']
  #allocation7 [shape = 's32[]', space=sflag, size = 0x4, offset = 0, fixed_abs, tag = 'sflag constant byte address 0x0 - dummy sync flag']
  #allocation8 [shape = 's32[]', space=sflag, size = 0x4, offset = 0, fixed_abs, tag = 'sflag constant byte address 0x0 - dummy sync flag']
  #allocation9 [shape = 's32[]', space=sflag, size = 0x4, offset = 0, fixed_abs, tag = 'sflag constant byte address 0x0 - dummy sync flag']
  #allocation10 [shape = 's32[]', space=sflag, size = 0x4, offset = 0, fixed_abs, tag = 'sflag constant byte address 0x0 - dummy sync flag']
  #allocation11 [shape = 's32[]', space=sflag, size = 0x4, offset = 0, fixed_abs, tag = 'sflag constant byte address 0x0 - dummy sync flag']
  #allocation12 [shape = 's32[]', space=sflag, size = 0x4, offset = 0, fixed_abs, tag = 'sflag constant byte address 0x0 - dummy sync flag']
  #allocation13 [shape = 's32[]', space=sflag, size = 0x4, offset = 0, fixed_abs, tag = 'sflag constant byte address 0x0 - dummy sync flag']
  #allocation14 [shape = 's32[]', space=sflag, size = 0x4, offset = 0, fixed_abs, tag = 'sflag constant byte address 0x0 - dummy sync flag']
  %s0 = inlined_call_operand.vmem [shape: s32[16], index: 0, kind: input, shape index: {}]
  %s1 = inlined_call_operand.vmem [shape: f32[128,32], index: 1, kind: input, shape index: {}]
  %s2 = inlined_call_operand.hbm [shape: f32[16,32], index: 2, kind: output, shape index: {}]
  %s3 = sld [smem:[#allocation0]]
  $region265: #{tpu_custom_call.1} parent=0
    _
  %s5 = ssub.s32 1, %s3
  %s6 = scalar_select 0, %s5, %s3
  %s7 = sshll.u32 %s0, 4
  %s8 = int_to_ptr.vmem [resolvable:$true] %s7
  %10 = dma.vmem_to_smem %s8, 16, [#allocation4], [#allocation3]
  %11 = dma.done [#allocation3], 16
  %12 = sfence
  $region1: #{tpu_custom_call.1} parent=0
    #allocation5 [shape = 'u8[8192]{0}', space=vmem, size = 0x2000, scoped, tag = 'output window, operand 0']
    #allocation6 [shape = 's32[2]{0}', space=sflag, size = 0x8, scoped, tag = 'scoped memory for tpu_custom_call.1']
    %13 = vsyncpa [#allocation6], 0
    %s14 = scalar_lea.sflag [#allocation6], 1
    %15 = vsyncpa %s14, 0
    loop: start=0, step=1, limit=3
    $region2: #{tpu_custom_call.1} parent=1 // loop_pre_header
      _
    $region3: #{tpu_custom_call.1} parent=1 // loop_header
      %s17 = sphi 0, %s21
      %p18 = scmp.ge.s32.totalorder %s17, 3
      %s26 = sphi 0, %s28
      %s29 = sphi 0, %s26
      %s39 = sphi 0, %s29
    $region4: #{tpu_custom_call.1} parent=1 // loop_header_branch
      %20 = sbr.rel (%p18) target = $region8
    $region5: #{tpu_custom_call.1} parent=1 // loop_body
      %s22 = ssub.s32 %s17, 1
      %s23 = sadd.s32 %s17, 1
      %s24 = ssub.s32 %s17, %s23
      %p25 = scmp.eq.s32.totalorder %s24, 0
      %s27 = sadd.s32 %s26, 1
      %s28 = scalar_select %p25, %s26, %s27
      %p30 = pneg %p25
      %p31 = scmp.eq.s32.totalorder %s17, 1
      %p32 = por %p30, %p31
      %p33 = scmp.ne.s32.totalorder %s26, %s29
      %p34 = scmp.eq.s32.totalorder %s17, 0
      %p35 = por %p33, %p34
      %p36 = scmp.ne.s32.totalorder %s26, %s29
      %p37 = scmp.eq.s32.totalorder %s22, 1
      %p38 = por %p36, %p37
      %p40 = scmp.ne.s32.totalorder %s29, %s39
      %p41 = scmp.eq.s32.totalorder %s22, 0
      %p42 = por %p40, %p41
      %p43 = scmp.lt.s32.totalorder %s17, 2
      // Predicated region
      $region9: #{tpu_custom_call.1} parent=5 // pred_check
        %p44 = pneg %p43
      $region10: #{tpu_custom_call.1} parent=5 // pred_check_branch
        %46 = sbr.rel (%p44) target = $region12
      $region11: #{tpu_custom_call.1} parent=5 // pred_region
        %p47 = pneg %p35
        %p48 = pneg %p32
        %s49 = sand.u32 %s26, 1
        %s50 = scalar_lea.sflag [#allocation6], %s49
        %s51 = sand.u32 %s26, 1
        %s52 = smul.addr %s51, 8
        %s53 = scalar_lea.vmem [#allocation5], %s52
        %s54 = smul.u32 %s17, 8
        %s55 = sld [smem:[#allocation4 + %s54]]
        %p56 = scmp.gt.s32.totalorder %s55, 0
        %s57 = scalar_select %p56, %s55, 0
        %p58 = scmp.lt.s32.totalorder %s57, 127
        %s59 = scalar_select %p58, %s57, 127
        %s60 = scalar_lea.vmem %s1, %s59
        %p62 = scmp.lt.u32.totalorder 1, 8
        %p63 = pneg %p62
        // Predicated region
        $region13: #{tpu_custom_call.1} parent=11 // pred_check
          _
        $region14: #{tpu_custom_call.1} parent=11 // pred_check_branch
          %65 = sbr.rel (%p62) target = $region16
        $region15: #{tpu_custom_call.1} parent=11 // pred_region
          %s80 = sand.u32 1, 7
          %p81 = scmp.eq.s32.totalorder %s80, 0
          %p82 = pneg %p81
          // Predicated region
          $region28: #{tpu_custom_call.1} parent=15 // pred_check
            _
          $region29: #{tpu_custom_call.1} parent=15 // pred_check_branch
            %84 = sbr.rel (%p81) target = $region31
          $region30: #{tpu_custom_call.1} parent=15 // pred_region
            %s85 = sand.u32 1, 7
            %s86 = ssub.s32 1, %s85
            %s87 = scalar_lea.vmem %s60, %s86
            %s88 = ssub.s32 1, %s85
            %s89 = scalar_lea.vmem %s53, %s88 [#allocation5]
            %s90 = sshllo.u32 0, %s85
            loop: start=0, step=1, limit=1
            $region32: #{tpu_custom_call.1} parent=30 // loop_pre_header
              _
            $region33: #{tpu_custom_call.1} parent=30 // loop_header
              %s92 = sphi 0, %s96
              %p93 = scmp.ge.s32.totalorder %s92, 1
              %s97 = sphi %s87, %s87
              %s98 = sphi %s89, %s89
            $region34: #{tpu_custom_call.1} parent=30 // loop_header_branch
              %95 = sbr.rel (%p93) target = $region38
            $region35: #{tpu_custom_call.1} parent=30 // loop_body
              %v99 = vld [vmem:[%s97] sm:%s90]
              %100 = vst [vmem:[%s98] sm:%s90] %v99
            $region36: #{tpu_custom_call.1} parent=30 // loop_footer
              %s96 = sadd.s32 1, %s92
            $region37: #{tpu_custom_call.1} parent=30 // loop_footer_branch
              %91 = sbr.rel target = $region33
            $region38: #{tpu_custom_call.1} parent=30 // loop_exit
              _
          $region31: #{tpu_custom_call.1} parent=15 // pred_fallthru
            _
        $region16: #{tpu_custom_call.1} parent=11 // pred_fallthru
          _
        // Predicated region
        $region17: #{tpu_custom_call.1} parent=11 // pred_check
          %p66 = pneg %p62
        $region18: #{tpu_custom_call.1} parent=11 // pred_check_branch
          %68 = sbr.rel (%p66) target = $region20
        $region19: #{tpu_custom_call.1} parent=11 // pred_region
          %s69 = sshllo.u32 0, 1
          loop: start=0, step=1, limit=1
          $region21: #{tpu_custom_call.1} parent=19 // loop_pre_header
            _
          $region22: #{tpu_custom_call.1} parent=19 // loop_header
            %s71 = sphi 0, %s75
            %p72 = scmp.ge.s32.totalorder %s71, 1
            %s76 = sphi %s60, %s60
            %s77 = sphi %s53, %s53
          $region23: #{tpu_custom_call.1} parent=19 // loop_header_branch
            %74 = sbr.rel (%p72) target = $region27
          $region24: #{tpu_custom_call.1} parent=19 // loop_body
            %v78 = vld [vmem:[%s76] sm:%s69]
            %79 = vst [vmem:[%s77] sm:%s69] %v78
          $region25: #{tpu_custom_call.1} parent=19 // loop_footer
            %s75 = sadd.s32 1, %s71
          $region26: #{tpu_custom_call.1} parent=19 // loop_footer_branch
            %70 = sbr.rel target = $region22
          $region27: #{tpu_custom_call.1} parent=19 // loop_exit
            _
        $region20: #{tpu_custom_call.1} parent=11 // pred_fallthru
          _
        // Predicated region
        $region39: #{tpu_custom_call.1} parent=11 // pred_check
          _
        $region40: #{tpu_custom_call.1} parent=11 // pred_check_branch
          %103 = sbr.rel (0) target = $region42
        $region41: #{tpu_custom_call.1} parent=11 // pred_region
          %104 = vsyncadd [#allocation2], 16
        $region42: #{tpu_custom_call.1} parent=11 // pred_fallthru
          _
        %s105 = sadd.s32 %s54, 1
        %s106 = sld [smem:[#allocation4 + %s105]]
        %p107 = scmp.gt.s32.totalorder %s106, 0
        %s108 = scalar_select %p107, %s106, 0
        %p109 = scmp.lt.s32.totalorder %s108, 127
        %s110 = scalar_select %p109, %s108, 127
        %s111 = scalar_lea.vmem %s1, %s110
        %s112 = scalar_lea.vmem %s53, 1 [#allocation5]
        %p114 = scmp.lt.u32.totalorder 1, 8
        %p115 = pneg %p114
        // Predicated region
        $region43: #{tpu_custom_call.1} parent=11 // pred_check
          _
        $region44: #{tpu_custom_call.1} parent=11 // pred_check_branch
          %117 = sbr.rel (%p114) target = $region46
        $region45: #{tpu_custom_call.1} parent=11 // pred_region
          %s132 = sand.u32 1, 7
          %p133 = scmp.eq.s32.totalorder %s132, 0
          %p134 = pneg %p133
          // Predicated region
          $region58: #{tpu_custom_call.1} parent=45 // pred_check
            _
          $region59: #{tpu_custom_call.1} parent=45 // pred_check_branch
            %136 = sbr.rel (%p133) target = $region61
          $region60: #{tpu_custom_call.1} parent=45 // pred_region
            %s137 = sand.u32 1, 7
            %s138 = ssub.s32 1, %s137
            %s139 = scalar_lea.vmem %s111, %s138
            %s140 = ssub.s32 1, %s137
            %s141 = scalar_lea.vmem %s112, %s140 [#allocation5]
            %s142 = sshllo.u32 0, %s137
            loop: start=0, step=1, limit=1
            $region62: #{tpu_custom_call.1} parent=60 // loop_pre_header
              _
            $region63: #{tpu_custom_call.1} parent=60 // loop_header
              %s144 = sphi 0, %s148
              %p145 = scmp.ge.s32.totalorder %s144, 1
              %s149 = sphi %s139, %s139
              %s150 = sphi %s141, %s141
            $region64: #{tpu_custom_call.1} parent=60 // loop_header_branch
              %147 = sbr.rel (%p145) target = $region68
            $region65: #{tpu_custom_call.1} parent=60 // loop_body
              %v151 = vld [vmem:[%s149] sm:%s142]
              %152 = vst [vmem:[%s150] sm:%s142] %v151
            $region66: #{tpu_custom_call.1} parent=60 // loop_footer
              %s148 = sadd.s32 1, %s144
            $region67: #{tpu_custom_call.1} parent=60 // loop_footer_branch
              %143 = sbr.rel target = $region63
            $region68: #{tpu_custom_call.1} parent=60 // loop_exit
              _
          $region61: #{tpu_custom_call.1} parent=45 // pred_fallthru
            _
        $region46: #{tpu_custom_call.1} parent=11 // pred_fallthru
          _
        // Predicated region
        $region47: #{tpu_custom_call.1} parent=11 // pred_check
          %p118 = pneg %p114
        $region48: #{tpu_custom_call.1} parent=11 // pred_check_branch
          %120 = sbr.rel (%p118) target = $region50
        $region49: #{tpu_custom_call.1} parent=11 // pred_region
          %s121 = sshllo.u32 0, 1
          loop: start=0, step=1, limit=1
          $region51: #{tpu_custom_call.1} parent=49 // loop_pre_header
            _
          $region52: #{tpu_custom_call.1} parent=49 // loop_header
            %s123 = sphi 0, %s127
            %p124 = scmp.ge.s32.totalorder %s123, 1
            %s128 = sphi %s111, %s111
            %s129 = sphi %s112, %s112
          $region53: #{tpu_custom_call.1} parent=49 // loop_header_branch
            %126 = sbr.rel (%p124) target = $region57
          $region54: #{tpu_custom_call.1} parent=49 // loop_body
            %v130 = vld [vmem:[%s128] sm:%s121]
            %131 = vst [vmem:[%s129] sm:%s121] %v130
          $region55: #{tpu_custom_call.1} parent=49 // loop_footer
            %s127 = sadd.s32 1, %s123
          $region56: #{tpu_custom_call.1} parent=49 // loop_footer_branch
            %122 = sbr.rel target = $region52
          $region57: #{tpu_custom_call.1} parent=49 // loop_exit
            _
        $region50: #{tpu_custom_call.1} parent=11 // pred_fallthru
          _
        // Predicated region
        $region69: #{tpu_custom_call.1} parent=11 // pred_check
          _
        $region70: #{tpu_custom_call.1} parent=11 // pred_check_branch
          %155 = sbr.rel (0) target = $region72
        $region71: #{tpu_custom_call.1} parent=11 // pred_region
          %156 = vsyncadd [#allocation2], 16
        $region72: #{tpu_custom_call.1} parent=11 // pred_fallthru
          _
        %s157 = sadd.s32 %s54, 2
        %s158 = sld [smem:[#allocation4 + %s157]]
        %p159 = scmp.gt.s32.totalorder %s158, 0
        %s160 = scalar_select %p159, %s158, 0
        %p161 = scmp.lt.s32.totalorder %s160, 127
        %s162 = scalar_select %p161, %s160, 127
        %s163 = scalar_lea.vmem %s1, %s162
        %s164 = scalar_lea.vmem %s53, 2 [#allocation5]
        %p166 = scmp.lt.u32.totalorder 1, 8
        %p167 = pneg %p166
        // Predicated region
        $region73: #{tpu_custom_call.1} parent=11 // pred_check
          _
        $region74: #{tpu_custom_call.1} parent=11 // pred_check_branch
          %169 = sbr.rel (%p166) target = $region76
        $region75: #{tpu_custom_call.1} parent=11 // pred_region
          %s184 = sand.u32 1, 7
          %p185 = scmp.eq.s32.totalorder %s184, 0
          %p186 = pneg %p185
          // Predicated region
          $region88: #{tpu_custom_call.1} parent=75 // pred_check
            _
          $region89: #{tpu_custom_call.1} parent=75 // pred_check_branch
            %188 = sbr.rel (%p185) target = $region91
          $region90: #{tpu_custom_call.1} parent=75 // pred_region
            %s189 = sand.u32 1, 7
            %s190 = ssub.s32 1, %s189
            %s191 = scalar_lea.vmem %s163, %s190
            %s192 = ssub.s32 1, %s189
            %s193 = scalar_lea.vmem %s164, %s192 [#allocation5]
            %s194 = sshllo.u32 0, %s189
            loop: start=0, step=1, limit=1
            $region92: #{tpu_custom_call.1} parent=90 // loop_pre_header
              _
            $region93: #{tpu_custom_call.1} parent=90 // loop_header
              %s196 = sphi 0, %s200
              %p197 = scmp.ge.s32.totalorder %s196, 1
              %s201 = sphi %s191, %s191
              %s202 = sphi %s193, %s193
            $region94: #{tpu_custom_call.1} parent=90 // loop_header_branch
              %199 = sbr.rel (%p197) target = $region98
            $region95: #{tpu_custom_call.1} parent=90 // loop_body
              %v203 = vld [vmem:[%s201] sm:%s194]
              %204 = vst [vmem:[%s202] sm:%s194] %v203
            $region96: #{tpu_custom_call.1} parent=90 // loop_footer
              %s200 = sadd.s32 1, %s196
            $region97: #{tpu_custom_call.1} parent=90 // loop_footer_branch
              %195 = sbr.rel target = $region93
            $region98: #{tpu_custom_call.1} parent=90 // loop_exit
              _
          $region91: #{tpu_custom_call.1} parent=75 // pred_fallthru
            _
        $region76: #{tpu_custom_call.1} parent=11 // pred_fallthru
          _
        // Predicated region
        $region77: #{tpu_custom_call.1} parent=11 // pred_check
          %p170 = pneg %p166
        $region78: #{tpu_custom_call.1} parent=11 // pred_check_branch
          %172 = sbr.rel (%p170) target = $region80
        $region79: #{tpu_custom_call.1} parent=11 // pred_region
          %s173 = sshllo.u32 0, 1
          loop: start=0, step=1, limit=1
          $region81: #{tpu_custom_call.1} parent=79 // loop_pre_header
            _
          $region82: #{tpu_custom_call.1} parent=79 // loop_header
            %s175 = sphi 0, %s179
            %p176 = scmp.ge.s32.totalorder %s175, 1
            %s180 = sphi %s163, %s163
            %s181 = sphi %s164, %s164
          $region83: #{tpu_custom_call.1} parent=79 // loop_header_branch
            %178 = sbr.rel (%p176) target = $region87
          $region84: #{tpu_custom_call.1} parent=79 // loop_body
            %v182 = vld [vmem:[%s180] sm:%s173]
            %183 = vst [vmem:[%s181] sm:%s173] %v182
          $region85: #{tpu_custom_call.1} parent=79 // loop_footer
            %s179 = sadd.s32 1, %s175
          $region86: #{tpu_custom_call.1} parent=79 // loop_footer_branch
            %174 = sbr.rel target = $region82
          $region87: #{tpu_custom_call.1} parent=79 // loop_exit
            _
        $region80: #{tpu_custom_call.1} parent=11 // pred_fallthru
          _
        // Predicated region
        $region99: #{tpu_custom_call.1} parent=11 // pred_check
          _
        $region100: #{tpu_custom_call.1} parent=11 // pred_check_branch
          %207 = sbr.rel (0) target = $region102
        $region101: #{tpu_custom_call.1} parent=11 // pred_region
          %208 = vsyncadd [#allocation2], 16
        $region102: #{tpu_custom_call.1} parent=11 // pred_fallthru
          _
        %s209 = sadd.s32 %s54, 3
        %s210 = sld [smem:[#allocation4 + %s209]]
        %p211 = scmp.gt.s32.totalorder %s210, 0
        %s212 = scalar_select %p211, %s210, 0
        %p213 = scmp.lt.s32.totalorder %s212, 127
        %s214 = scalar_select %p213, %s212, 127
        %s215 = scalar_lea.vmem %s1, %s214
        %s216 = scalar_lea.vmem %s53, 3 [#allocation5]
        %p218 = scmp.lt.u32.totalorder 1, 8
        %p219 = pneg %p218
        // Predicated region
        $region103: #{tpu_custom_call.1} parent=11 // pred_check
          _
        $region104: #{tpu_custom_call.1} parent=11 // pred_check_branch
          %221 = sbr.rel (%p218) target = $region106
        $region105: #{tpu_custom_call.1} parent=11 // pred_region
          %s236 = sand.u32 1, 7
          %p237 = scmp.eq.s32.totalorder %s236, 0
          %p238 = pneg %p237
          // Predicated region
          $region118: #{tpu_custom_call.1} parent=105 // pred_check
            _
          $region119: #{tpu_custom_call.1} parent=105 // pred_check_branch
            %240 = sbr.rel (%p237) target = $region121
          $region120: #{tpu_custom_call.1} parent=105 // pred_region
            %s241 = sand.u32 1, 7
            %s242 = ssub.s32 1, %s241
            %s243 = scalar_lea.vmem %s215, %s242
            %s244 = ssub.s32 1, %s241
            %s245 = scalar_lea.vmem %s216, %s244 [#allocation5]
            %s246 = sshllo.u32 0, %s241
            loop: start=0, step=1, limit=1
            $region122: #{tpu_custom_call.1} parent=120 // loop_pre_header
              _
            $region123: #{tpu_custom_call.1} parent=120 // loop_header
              %s248 = sphi 0, %s252
              %p249 = scmp.ge.s32.totalorder %s248, 1
              %s253 = sphi %s243, %s243
              %s254 = sphi %s245, %s245
            $region124: #{tpu_custom_call.1} parent=120 // loop_header_branch
              %251 = sbr.rel (%p249) target = $region128
            $region125: #{tpu_custom_call.1} parent=120 // loop_body
              %v255 = vld [vmem:[%s253] sm:%s246]
              %256 = vst [vmem:[%s254] sm:%s246] %v255
            $region126: #{tpu_custom_call.1} parent=120 // loop_footer
              %s252 = sadd.s32 1, %s248
            $region127: #{tpu_custom_call.1} parent=120 // loop_footer_branch
              %247 = sbr.rel target = $region123
            $region128: #{tpu_custom_call.1} parent=120 // loop_exit
              _
          $region121: #{tpu_custom_call.1} parent=105 // pred_fallthru
            _
        $region106: #{tpu_custom_call.1} parent=11 // pred_fallthru
          _
        // Predicated region
        $region107: #{tpu_custom_call.1} parent=11 // pred_check
          %p222 = pneg %p218
        $region108: #{tpu_custom_call.1} parent=11 // pred_check_branch
          %224 = sbr.rel (%p222) target = $region110
        $region109: #{tpu_custom_call.1} parent=11 // pred_region
          %s225 = sshllo.u32 0, 1
          loop: start=0, step=1, limit=1
          $region111: #{tpu_custom_call.1} parent=109 // loop_pre_header
            _
          $region112: #{tpu_custom_call.1} parent=109 // loop_header
            %s227 = sphi 0, %s231
            %p228 = scmp.ge.s32.totalorder %s227, 1
            %s232 = sphi %s215, %s215
            %s233 = sphi %s216, %s216
          $region113: #{tpu_custom_call.1} parent=109 // loop_header_branch
            %230 = sbr.rel (%p228) target = $region117
          $region114: #{tpu_custom_call.1} parent=109 // loop_body
            %v234 = vld [vmem:[%s232] sm:%s225]
            %235 = vst [vmem:[%s233] sm:%s225] %v234
          $region115: #{tpu_custom_call.1} parent=109 // loop_footer
            %s231 = sadd.s32 1, %s227
          $region116: #{tpu_custom_call.1} parent=109 // loop_footer_branch
            %226 = sbr.rel target = $region112
          $region117: #{tpu_custom_call.1} parent=109 // loop_exit
            _
        $region110: #{tpu_custom_call.1} parent=11 // pred_fallthru
          _
        // Predicated region
        $region129: #{tpu_custom_call.1} parent=11 // pred_check
          _
        $region130: #{tpu_custom_call.1} parent=11 // pred_check_branch
          %259 = sbr.rel (0) target = $region132
        $region131: #{tpu_custom_call.1} parent=11 // pred_region
          %260 = vsyncadd [#allocation2], 16
        $region132: #{tpu_custom_call.1} parent=11 // pred_fallthru
          _
        %s261 = sadd.s32 %s54, 4
        %s262 = sld [smem:[#allocation4 + %s261]]
        %p263 = scmp.gt.s32.totalorder %s262, 0
        %s264 = scalar_select %p263, %s262, 0
        %p265 = scmp.lt.s32.totalorder %s264, 127
        %s266 = scalar_select %p265, %s264, 127
        %s267 = scalar_lea.vmem %s1, %s266
        %s268 = scalar_lea.vmem %s53, 4 [#allocation5]
        %p270 = scmp.lt.u32.totalorder 1, 8
        %p271 = pneg %p270
        // Predicated region
        $region133: #{tpu_custom_call.1} parent=11 // pred_check
          _
        $region134: #{tpu_custom_call.1} parent=11 // pred_check_branch
          %273 = sbr.rel (%p270) target = $region136
        $region135: #{tpu_custom_call.1} parent=11 // pred_region
          %s288 = sand.u32 1, 7
          %p289 = scmp.eq.s32.totalorder %s288, 0
          %p290 = pneg %p289
          // Predicated region
          $region148: #{tpu_custom_call.1} parent=135 // pred_check
            _
          $region149: #{tpu_custom_call.1} parent=135 // pred_check_branch
            %292 = sbr.rel (%p289) target = $region151
          $region150: #{tpu_custom_call.1} parent=135 // pred_region
            %s293 = sand.u32 1, 7
            %s294 = ssub.s32 1, %s293
            %s295 = scalar_lea.vmem %s267, %s294
            %s296 = ssub.s32 1, %s293
            %s297 = scalar_lea.vmem %s268, %s296 [#allocation5]
            %s298 = sshllo.u32 0, %s293
            loop: start=0, step=1, limit=1
            $region152: #{tpu_custom_call.1} parent=150 // loop_pre_header
              _
            $region153: #{tpu_custom_call.1} parent=150 // loop_header
              %s300 = sphi 0, %s304
              %p301 = scmp.ge.s32.totalorder %s300, 1
              %s305 = sphi %s295, %s295
              %s306 = sphi %s297, %s297
            $region154: #{tpu_custom_call.1} parent=150 // loop_header_branch
              %303 = sbr.rel (%p301) target = $region158
            $region155: #{tpu_custom_call.1} parent=150 // loop_body
              %v307 = vld [vmem:[%s305] sm:%s298]
              %308 = vst [vmem:[%s306] sm:%s298] %v307
            $region156: #{tpu_custom_call.1} parent=150 // loop_footer
              %s304 = sadd.s32 1, %s300
            $region157: #{tpu_custom_call.1} parent=150 // loop_footer_branch
              %299 = sbr.rel target = $region153
            $region158: #{tpu_custom_call.1} parent=150 // loop_exit
              _
          $region151: #{tpu_custom_call.1} parent=135 // pred_fallthru
            _
        $region136: #{tpu_custom_call.1} parent=11 // pred_fallthru
          _
        // Predicated region
        $region137: #{tpu_custom_call.1} parent=11 // pred_check
          %p274 = pneg %p270
        $region138: #{tpu_custom_call.1} parent=11 // pred_check_branch
          %276 = sbr.rel (%p274) target = $region140
        $region139: #{tpu_custom_call.1} parent=11 // pred_region
          %s277 = sshllo.u32 0, 1
          loop: start=0, step=1, limit=1
          $region141: #{tpu_custom_call.1} parent=139 // loop_pre_header
            _
          $region142: #{tpu_custom_call.1} parent=139 // loop_header
            %s279 = sphi 0, %s283
            %p280 = scmp.ge.s32.totalorder %s279, 1
            %s284 = sphi %s267, %s267
            %s285 = sphi %s268, %s268
          $region143: #{tpu_custom_call.1} parent=139 // loop_header_branch
            %282 = sbr.rel (%p280) target = $region147
          $region144: #{tpu_custom_call.1} parent=139 // loop_body
            %v286 = vld [vmem:[%s284] sm:%s277]
            %287 = vst [vmem:[%s285] sm:%s277] %v286
          $region145: #{tpu_custom_call.1} parent=139 // loop_footer
            %s283 = sadd.s32 1, %s279
          $region146: #{tpu_custom_call.1} parent=139 // loop_footer_branch
            %278 = sbr.rel target = $region142
          $region147: #{tpu_custom_call.1} parent=139 // loop_exit
            _
        $region140: #{tpu_custom_call.1} parent=11 // pred_fallthru
          _
        // Predicated region
        $region159: #{tpu_custom_call.1} parent=11 // pred_check
          _
        $region160: #{tpu_custom_call.1} parent=11 // pred_check_branch
          %311 = sbr.rel (0) target = $region162
        $region161: #{tpu_custom_call.1} parent=11 // pred_region
          %312 = vsyncadd [#allocation2], 16
        $region162: #{tpu_custom_call.1} parent=11 // pred_fallthru
          _
        %s313 = sadd.s32 %s54, 5
        %s314 = sld [smem:[#allocation4 + %s313]]
        %p315 = scmp.gt.s32.totalorder %s314, 0
        %s316 = scalar_select %p315, %s314, 0
        %p317 = scmp.lt.s32.totalorder %s316, 127
        %s318 = scalar_select %p317, %s316, 127
        %s319 = scalar_lea.vmem %s1, %s318
        %s320 = scalar_lea.vmem %s53, 5 [#allocation5]
        %p322 = scmp.lt.u32.totalorder 1, 8
        %p323 = pneg %p322
        // Predicated region
        $region163: #{tpu_custom_call.1} parent=11 // pred_check
          _
        $region164: #{tpu_custom_call.1} parent=11 // pred_check_branch
          %325 = sbr.rel (%p322) target = $region166
        $region165: #{tpu_custom_call.1} parent=11 // pred_region
          %s340 = sand.u32 1, 7
          %p341 = scmp.eq.s32.totalorder %s340, 0
          %p342 = pneg %p341
          // Predicated region
          $region178: #{tpu_custom_call.1} parent=165 // pred_check
            _
          $region179: #{tpu_custom_call.1} parent=165 // pred_check_branch
            %344 = sbr.rel (%p341) target = $region181
          $region180: #{tpu_custom_call.1} parent=165 // pred_region
            %s345 = sand.u32 1, 7
            %s346 = ssub.s32 1, %s345
            %s347 = scalar_lea.vmem %s319, %s346
            %s348 = ssub.s32 1, %s345
            %s349 = scalar_lea.vmem %s320, %s348 [#allocation5]
            %s350 = sshllo.u32 0, %s345
            loop: start=0, step=1, limit=1
            $region182: #{tpu_custom_call.1} parent=180 // loop_pre_header
              _
            $region183: #{tpu_custom_call.1} parent=180 // loop_header
              %s352 = sphi 0, %s356
              %p353 = scmp.ge.s32.totalorder %s352, 1
              %s357 = sphi %s347, %s347
              %s358 = sphi %s349, %s349
            $region184: #{tpu_custom_call.1} parent=180 // loop_header_branch
              %355 = sbr.rel (%p353) target = $region188
            $region185: #{tpu_custom_call.1} parent=180 // loop_body
              %v359 = vld [vmem:[%s357] sm:%s350]
              %360 = vst [vmem:[%s358] sm:%s350] %v359
            $region186: #{tpu_custom_call.1} parent=180 // loop_footer
              %s356 = sadd.s32 1, %s352
            $region187: #{tpu_custom_call.1} parent=180 // loop_footer_branch
              %351 = sbr.rel target = $region183
            $region188: #{tpu_custom_call.1} parent=180 // loop_exit
              _
          $region181: #{tpu_custom_call.1} parent=165 // pred_fallthru
            _
        $region166: #{tpu_custom_call.1} parent=11 // pred_fallthru
          _
        // Predicated region
        $region167: #{tpu_custom_call.1} parent=11 // pred_check
          %p326 = pneg %p322
        $region168: #{tpu_custom_call.1} parent=11 // pred_check_branch
          %328 = sbr.rel (%p326) target = $region170
        $region169: #{tpu_custom_call.1} parent=11 // pred_region
          %s329 = sshllo.u32 0, 1
          loop: start=0, step=1, limit=1
          $region171: #{tpu_custom_call.1} parent=169 // loop_pre_header
            _
          $region172: #{tpu_custom_call.1} parent=169 // loop_header
            %s331 = sphi 0, %s335
            %p332 = scmp.ge.s32.totalorder %s331, 1
            %s336 = sphi %s319, %s319
            %s337 = sphi %s320, %s320
          $region173: #{tpu_custom_call.1} parent=169 // loop_header_branch
            %334 = sbr.rel (%p332) target = $region177
          $region174: #{tpu_custom_call.1} parent=169 // loop_body
            %v338 = vld [vmem:[%s336] sm:%s329]
            %339 = vst [vmem:[%s337] sm:%s329] %v338
          $region175: #{tpu_custom_call.1} parent=169 // loop_footer
            %s335 = sadd.s32 1, %s331
          $region176: #{tpu_custom_call.1} parent=169 // loop_footer_branch
            %330 = sbr.rel target = $region172
          $region177: #{tpu_custom_call.1} parent=169 // loop_exit
            _
        $region170: #{tpu_custom_call.1} parent=11 // pred_fallthru
          _
        // Predicated region
        $region189: #{tpu_custom_call.1} parent=11 // pred_check
          _
        $region190: #{tpu_custom_call.1} parent=11 // pred_check_branch
          %363 = sbr.rel (0) target = $region192
        $region191: #{tpu_custom_call.1} parent=11 // pred_region
          %364 = vsyncadd [#allocation2], 16
        $region192: #{tpu_custom_call.1} parent=11 // pred_fallthru
          _
        %s365 = sadd.s32 %s54, 6
        %s366 = sld [smem:[#allocation4 + %s365]]
        %p367 = scmp.gt.s32.totalorder %s366, 0
        %s368 = scalar_select %p367, %s366, 0
        %p369 = scmp.lt.s32.totalorder %s368, 127
        %s370 = scalar_select %p369, %s368, 127
        %s371 = scalar_lea.vmem %s1, %s370
        %s372 = scalar_lea.vmem %s53, 6 [#allocation5]
        %p374 = scmp.lt.u32.totalorder 1, 8
        %p375 = pneg %p374
        // Predicated region
        $region193: #{tpu_custom_call.1} parent=11 // pred_check
          _
        $region194: #{tpu_custom_call.1} parent=11 // pred_check_branch
          %377 = sbr.rel (%p374) target = $region196
        $region195: #{tpu_custom_call.1} parent=11 // pred_region
          %s392 = sand.u32 1, 7
          %p393 = scmp.eq.s32.totalorder %s392, 0
          %p394 = pneg %p393
          // Predicated region
          $region208: #{tpu_custom_call.1} parent=195 // pred_check
            _
          $region209: #{tpu_custom_call.1} parent=195 // pred_check_branch
            %396 = sbr.rel (%p393) target = $region211
          $region210: #{tpu_custom_call.1} parent=195 // pred_region
            %s397 = sand.u32 1, 7
            %s398 = ssub.s32 1, %s397
            %s399 = scalar_lea.vmem %s371, %s398
            %s400 = ssub.s32 1, %s397
            %s401 = scalar_lea.vmem %s372, %s400 [#allocation5]
            %s402 = sshllo.u32 0, %s397
            loop: start=0, step=1, limit=1
            $region212: #{tpu_custom_call.1} parent=210 // loop_pre_header
              _
            $region213: #{tpu_custom_call.1} parent=210 // loop_header
              %s404 = sphi 0, %s408
              %p405 = scmp.ge.s32.totalorder %s404, 1
              %s409 = sphi %s399, %s399
              %s410 = sphi %s401, %s401
            $region214: #{tpu_custom_call.1} parent=210 // loop_header_branch
              %407 = sbr.rel (%p405) target = $region218
            $region215: #{tpu_custom_call.1} parent=210 // loop_body
              %v411 = vld [vmem:[%s409] sm:%s402]
              %412 = vst [vmem:[%s410] sm:%s402] %v411
            $region216: #{tpu_custom_call.1} parent=210 // loop_footer
              %s408 = sadd.s32 1, %s404
            $region217: #{tpu_custom_call.1} parent=210 // loop_footer_branch
              %403 = sbr.rel target = $region213
            $region218: #{tpu_custom_call.1} parent=210 // loop_exit
              _
          $region211: #{tpu_custom_call.1} parent=195 // pred_fallthru
            _
        $region196: #{tpu_custom_call.1} parent=11 // pred_fallthru
          _
        // Predicated region
        $region197: #{tpu_custom_call.1} parent=11 // pred_check
          %p378 = pneg %p374
        $region198: #{tpu_custom_call.1} parent=11 // pred_check_branch
          %380 = sbr.rel (%p378) target = $region200
        $region199: #{tpu_custom_call.1} parent=11 // pred_region
          %s381 = sshllo.u32 0, 1
          loop: start=0, step=1, limit=1
          $region201: #{tpu_custom_call.1} parent=199 // loop_pre_header
            _
          $region202: #{tpu_custom_call.1} parent=199 // loop_header
            %s383 = sphi 0, %s387
            %p384 = scmp.ge.s32.totalorder %s383, 1
            %s388 = sphi %s371, %s371
            %s389 = sphi %s372, %s372
          $region203: #{tpu_custom_call.1} parent=199 // loop_header_branch
            %386 = sbr.rel (%p384) target = $region207
          $region204: #{tpu_custom_call.1} parent=199 // loop_body
            %v390 = vld [vmem:[%s388] sm:%s381]
            %391 = vst [vmem:[%s389] sm:%s381] %v390
          $region205: #{tpu_custom_call.1} parent=199 // loop_footer
            %s387 = sadd.s32 1, %s383
          $region206: #{tpu_custom_call.1} parent=199 // loop_footer_branch
            %382 = sbr.rel target = $region202
          $region207: #{tpu_custom_call.1} parent=199 // loop_exit
            _
        $region200: #{tpu_custom_call.1} parent=11 // pred_fallthru
          _
        // Predicated region
        $region219: #{tpu_custom_call.1} parent=11 // pred_check
          _
        $region220: #{tpu_custom_call.1} parent=11 // pred_check_branch
          %415 = sbr.rel (0) target = $region222
        $region221: #{tpu_custom_call.1} parent=11 // pred_region
          %416 = vsyncadd [#allocation2], 16
        $region222: #{tpu_custom_call.1} parent=11 // pred_fallthru
          _
        %s417 = sadd.s32 %s54, 7
        %s418 = sld [smem:[#allocation4 + %s417]]
        %p419 = scmp.gt.s32.totalorder %s418, 0
        %s420 = scalar_select %p419, %s418, 0
        %p421 = scmp.lt.s32.totalorder %s420, 127
        %s422 = scalar_select %p421, %s420, 127
        %s423 = scalar_lea.vmem %s1, %s422
        %s424 = scalar_lea.vmem %s53, 7 [#allocation5]
        %p426 = scmp.lt.u32.totalorder 1, 8
        %p427 = pneg %p426
        // Predicated region
        $region223: #{tpu_custom_call.1} parent=11 // pred_check
          _
        $region224: #{tpu_custom_call.1} parent=11 // pred_check_branch
          %429 = sbr.rel (%p426) target = $region226
        $region225: #{tpu_custom_call.1} parent=11 // pred_region
          %s444 = sand.u32 1, 7
          %p445 = scmp.eq.s32.totalorder %s444, 0
          %p446 = pneg %p445
          // Predicated region
          $region238: #{tpu_custom_call.1} parent=225 // pred_check
            _
          $region239: #{tpu_custom_call.1} parent=225 // pred_check_branch
            %448 = sbr.rel (%p445) target = $region241
          $region240: #{tpu_custom_call.1} parent=225 // pred_region
            %s449 = sand.u32 1, 7
            %s450 = ssub.s32 1, %s449
            %s451 = scalar_lea.vmem %s423, %s450
            %s452 = ssub.s32 1, %s449
            %s453 = scalar_lea.vmem %s424, %s452 [#allocation5]
            %s454 = sshllo.u32 0, %s449
            loop: start=0, step=1, limit=1
            $region242: #{tpu_custom_call.1} parent=240 // loop_pre_header
              _
            $region243: #{tpu_custom_call.1} parent=240 // loop_header
              %s456 = sphi 0, %s460
              %p457 = scmp.ge.s32.totalorder %s456, 1
              %s461 = sphi %s451, %s451
              %s462 = sphi %s453, %s453
            $region244: #{tpu_custom_call.1} parent=240 // loop_header_branch
              %459 = sbr.rel (%p457) target = $region248
            $region245: #{tpu_custom_call.1} parent=240 // loop_body
              %v463 = vld [vmem:[%s461] sm:%s454]
              %464 = vst [vmem:[%s462] sm:%s454] %v463
            $region246: #{tpu_custom_call.1} parent=240 // loop_footer
              %s460 = sadd.s32 1, %s456
            $region247: #{tpu_custom_call.1} parent=240 // loop_footer_branch
              %455 = sbr.rel target = $region243
            $region248: #{tpu_custom_call.1} parent=240 // loop_exit
              _
          $region241: #{tpu_custom_call.1} parent=225 // pred_fallthru
            _
        $region226: #{tpu_custom_call.1} parent=11 // pred_fallthru
          _
        // Predicated region
        $region227: #{tpu_custom_call.1} parent=11 // pred_check
          %p430 = pneg %p426
        $region228: #{tpu_custom_call.1} parent=11 // pred_check_branch
          %432 = sbr.rel (%p430) target = $region230
        $region229: #{tpu_custom_call.1} parent=11 // pred_region
          %s433 = sshllo.u32 0, 1
          loop: start=0, step=1, limit=1
          $region231: #{tpu_custom_call.1} parent=229 // loop_pre_header
            _
          $region232: #{tpu_custom_call.1} parent=229 // loop_header
            %s435 = sphi 0, %s439
            %p436 = scmp.ge.s32.totalorder %s435, 1
            %s440 = sphi %s423, %s423
            %s441 = sphi %s424, %s424
          $region233: #{tpu_custom_call.1} parent=229 // loop_header_branch
            %438 = sbr.rel (%p436) target = $region237
          $region234: #{tpu_custom_call.1} parent=229 // loop_body
            %v442 = vld [vmem:[%s440] sm:%s433]
            %443 = vst [vmem:[%s441] sm:%s433] %v442
          $region235: #{tpu_custom_call.1} parent=229 // loop_footer
            %s439 = sadd.s32 1, %s435
          $region236: #{tpu_custom_call.1} parent=229 // loop_footer_branch
            %434 = sbr.rel target = $region232
          $region237: #{tpu_custom_call.1} parent=229 // loop_exit
            _
        $region230: #{tpu_custom_call.1} parent=11 // pred_fallthru
          _
        // Predicated region
        $region249: #{tpu_custom_call.1} parent=11 // pred_check
          _
        $region250: #{tpu_custom_call.1} parent=11 // pred_check_branch
          %467 = sbr.rel (0) target = $region252
        $region251: #{tpu_custom_call.1} parent=11 // pred_region
          %468 = vsyncadd [#allocation2], 16
        $region252: #{tpu_custom_call.1} parent=11 // pred_fallthru
          _
        %s469 = smul.u32 8, 1
        %s470 = sshll.u32 %s469, 4
        %471 = dma.done [#allocation2], %s470
        %s472 = sand.u32 %s26, 1
        %s473 = scalar_lea.sflag [#allocation6], %s472
        %s474 = sand.u32 %s26, 1
        %s475 = smul.addr %s474, 8
        %s476 = scalar_lea.vmem [#allocation5], %s475
        // Predicated region
        $region253: #{tpu_custom_call.1} parent=11 // pred_check
          %p477 = pneg %p32
        $region254: #{tpu_custom_call.1} parent=11 // pred_check_branch
          %479 = sbr.rel (%p477) target = $region256
        $region255: #{tpu_custom_call.1} parent=11 // pred_region
          %s481 = ssub.s32 128, 128
          %482 = vsyncadd %s473, %s481
          %s483 = smul.addr %s17, 128
          %s484 = scalar_lea.hbm %s2, %s483
          %s486 = sshll.u32 %s476, 4
          %s487 = int_to_ptr.vmem [resolvable:$true] %s486
          %489 = dma.vmem_to_hbm [thread:$0]  %s487, 128, %s484, %s473
        $region256: #{tpu_custom_call.1} parent=11 // pred_fallthru
          _
      $region12: #{tpu_custom_call.1} parent=5 // pred_fallthru
        _
      %p490 = scmp.le.s32.totalorder 1, %s17
      // Predicated region
      $region257: #{tpu_custom_call.1} parent=5 // pred_check
        %p491 = pneg %p490
      $region258: #{tpu_custom_call.1} parent=5 // pred_check_branch
        %493 = sbr.rel (%p491) target = $region260
      $region259: #{tpu_custom_call.1} parent=5 // pred_region
        %s494 = ssub.s32 %s17, 1
        // Predicated region
        $region261: #{tpu_custom_call.1} parent=259 // pred_check
          %p495 = pneg %p38
        $region262: #{tpu_custom_call.1} parent=259 // pred_check_branch
          %497 = sbr.rel (%p495) target = $region264
        $region263: #{tpu_custom_call.1} parent=259 // pred_region
          %s498 = sand.u32 %s29, 1
          %s499 = scalar_lea.sflag [#allocation6], %s498
          %s500 = sand.u32 %s29, 1
          %s501 = smul.addr %s500, 8
          %s502 = scalar_lea.vmem [#allocation5], %s501
          %503 = dma.done %s499, 128
        $region264: #{tpu_custom_call.1} parent=259 // pred_fallthru
          _
      $region260: #{tpu_custom_call.1} parent=5 // pred_fallthru
        _
    $region6: #{tpu_custom_call.1} parent=1 // loop_footer
      %s21 = sadd.s32 1, %s17
    $region7: #{tpu_custom_call.1} parent=1 // loop_footer_branch
      %16 = sbr.rel target = $region3
    $region8: #{tpu_custom_call.1} parent=1 // loop_exit
      _
    %504 = vsyncpa [#allocation6], 1
    %s505 = scalar_lea.sflag [#allocation6], 1
    %506 = vsyncpa %s505, 1
  %507 = vsyncmov [#allocation2]
  %s508 = vpop.sfrf %507
  %p509 = scmp.eq.s32.totalorder %s508, 0
  %p510 = pneg %p509
  %512 = shalt.err (%p510)

</llo_original>
